<compile_context>
chip_gen: v5e
topology: v5e:2x2
jax: 0.10.0
libtpu: 0.0.40
codegen_flags: <defaults>
</compile_context>

<pallas_src>
import functools

import jax
import jax.numpy as jnp
from jax import lax
from jax.experimental import pallas as pl
from jax.experimental.pallas import tpu as pltpu

_LANES = 128
_F32_BYTES = 4


def _tpu_vmem_limit_bytes():
    """Scoped-VMEM limit we are willing to request (generation aware)."""
    try:
        cap = int(pltpu.get_tpu_info().vmem_capacity_bytes)
    except Exception:
        cap = 64 * 1024 * 1024  # conservative default (v7x per-TC physical)
    # 64 MiB on 128 MiB parts (v5e/v6e), 32 MiB on 64 MiB parts (v7x).
    return min(cap // 2, 64 * 1024 * 1024)


def _pick_row_block(total_rows, in_f, out_f):
    """Rows (of 128 lane-samples each) per grid step, sized against VMEM.

    Per-step footprint ~= double-buffered x block (in_f row-slices) +
    double-buffered logits block (out_f row-slices) + an allowance of ~10
    row-slices for Mosaic temporaries (x row loads, row/total accumulators,
    tail mask).  Budget = half the requested scoped-VMEM limit.
    """
    budget = _tpu_vmem_limit_bytes() // 2
    per_row = _LANES * _F32_BYTES * (2 * in_f + 2 * out_f + 10)
    rb = max(8, (budget // per_row) // 8 * 8)
    return min(rb, total_rows)


def _dummy_linear_kernel(x_ref, w_ref, b_ref, logits_ref, psum_ref, *,
                         batch, block_rows, in_f, out_f, need_mask):
    """One lane-dense batch block.

    x_ref:      VMEM (in_f, block_rows, 128) f32  -- batch on (rows, lanes)
    w_ref:      SMEM (out_f, in_f) f32            -- PyTorch nn.Linear layout
    b_ref:      SMEM (out_f,) f32
    logits_ref: VMEM (out_f, block_rows, 128) f32
    psum_ref:   VMEM (1, 8, 128) f32              -- this block's logit sum,
                                                     broadcast over the tile
    """
    total = None
    for j in range(out_f):               # unrolled VPU contraction (no MXU)
        row = x_ref[0] * w_ref[j, 0]
        for k in range(1, in_f):
            row = row + x_ref[k] * w_ref[j, k]
        row = row + b_ref[j]
        logits_ref[j] = row
        total = row if total is None else total + row

    if need_mask:
        # Only the last block can contain padded / out-of-range samples; the
        # compare+select is a few VPU ops, negligible vs. the block DMA.
        base = pl.program_id(0) * (block_rows * _LANES)
        ridx = lax.broadcasted_iota(jnp.int32, (block_rows, _LANES), 0)
        lidx = lax.broadcasted_iota(jnp.int32, (block_rows, _LANES), 1)
        total = jnp.where(base + ridx * _LANES + lidx < batch, total, 0.0)

    block_sum = jnp.sum(total).reshape(1, 1, 1)
    psum_ref[...] = jnp.broadcast_to(block_sum, psum_ref.shape).astype(
        psum_ref.dtype)


def dummy_model_forward_feature_major(x_fm, weight, bias, *, row_block=None):
    """Fast path: x is feature-major [in_f, B]; returns ([out_f, B], loss).

    No wrapper-side HBM transpose: the [in_f, B] -> [in_f, B/128, 128] reshape
    is a zero-copy relayout whenever B is a multiple of 128.
    """
    in_f, batch = x_fm.shape
    out_f, in_f_w = weight.shape
    assert in_f == in_f_w, "weight/input feature mismatch"

    x_fm = x_fm.astype(jnp.float32)
    w = weight.astype(jnp.float32)
    b = bias.reshape(out_f).astype(jnp.float32)

    padded = -(-batch // _LANES) * _LANES
    if padded != batch:
        x_fm = jnp.pad(x_fm, ((0, 0), (0, padded - batch)))
    rows = padded // _LANES
    x3 = x_fm.reshape(in_f, rows, _LANES)

    if row_block is None:
        rb = _pick_row_block(rows, in_f, out_f)
    else:
        rb = min(int(row_block), rows)
        if rb < rows:  # second-to-last block dim must be 8-aligned or full
            rb = max(8, (rb // 8) * 8)
    nblocks = -(-rows // rb)
    need_mask = (padded != batch) or (rows % rb != 0)

    kernel = functools.partial(
        _dummy_linear_kernel, batch=batch, block_rows=rb,
        in_f=in_f, out_f=out_f, need_mask=need_mask)

    logits3, psum = pl.pallas_call(
        kernel,
        out_shape=(
            jax.ShapeDtypeStruct((out_f, rows, _LANES), jnp.float32),
            jax.ShapeDtypeStruct((nblocks, 8, _LANES), jnp.float32),
        ),
        grid=(nblocks,),
        in_specs=[
            pl.BlockSpec((in_f, rb, _LANES), lambda i: (0, i, 0)),
            pl.BlockSpec(memory_space=pltpu.MemorySpace.SMEM),  # weight
            pl.BlockSpec(memory_space=pltpu.MemorySpace.SMEM),  # bias
        ],
        out_specs=(
            pl.BlockSpec((out_f, rb, _LANES), lambda i: (0, i, 0)),
            pl.BlockSpec((1, 8, _LANES), lambda i: (i, 0, 0)),
        ),
        compiler_params=pltpu.CompilerParams(
            # No cross-step carry: each block owns its logits slab and its own
            # partial-sum tile, so the batch axis is safely "parallel"
            # (megacore on v7x, plain loop elsewhere).
            dimension_semantics=("parallel",),
            vmem_limit_bytes=_tpu_vmem_limit_bytes()),
    )(x3, w, b)

    logits_fm = logits3.reshape(out_f, padded)[:, :batch]
    loss = jnp.sum(psum[:, 0, 0]) * (1.0 / (batch * out_f))
    return logits_fm, loss


def dummy_model_forward(input_ids, weight, bias, *, attention_mask=None,
                        row_block=None):
    """PyTorch-layout API: input_ids [B, 4] -> (logits [B, 2], loss scalar)."""
    del attention_mask  # unused, as in DummyModel.forward
    x_fm = input_ids.astype(jnp.float32).T       # layout plumbing only
    logits_fm, loss = dummy_model_forward_feature_major(
        x_fm, weight, bias, row_block=row_block)
    return logits_fm.T, loss


def _reference(x, weight, bias):
    logits = jnp.dot(x, weight.T, precision=lax.Precision.HIGHEST) + bias
    return logits, logits.mean()


if __name__ == "__main__":
    key = jax.random.PRNGKey(0)
    k_x1, k_x2, k_x3, k_w, k_b = jax.random.split(key, 5)

    B, IN_F, OUT_F = 8, 4, 2
    bound = 1.0 / (IN_F ** 0.5)
    weight = jax.random.uniform(k_w, (OUT_F, IN_F), jnp.float32, -bound, bound)
    bias = jax.random.uniform(k_b, (OUT_F,), jnp.float32, -bound, bound)

    # (1) Tiny batch: single block, masked tail (B=8 < 128 lanes).
    x1 = jax.random.normal(k_x1, (B, IN_F), jnp.float32)
    logits1, loss1 = dummy_model_forward(x1, weight, bias)
    jax.block_until_ready((logits1, loss1))
    ref_l1, ref_loss1 = _reference(x1, weight, bias)
    assert logits1.shape == (B, OUT_F)
    assert jnp.allclose(logits1, ref_l1, atol=1e-5, rtol=1e-5)
    assert jnp.allclose(loss1, ref_loss1, atol=1e-5, rtol=1e-5)

    # (2) Unaligned batch, multi-block grid + masked tail (forced small blocks).
    B2 = 2500
    x2 = jax.random.normal(k_x2, (B2, IN_F), jnp.float32)
    logits2, loss2 = dummy_model_forward(x2, weight, bias, row_block=8)
    jax.block_until_ready((logits2, loss2))
    ref_l2, ref_loss2 = _reference(x2, weight, bias)
    assert logits2.shape == (B2, OUT_F)
    assert jnp.allclose(logits2, ref_l2, atol=1e-5, rtol=1e-5)
    assert jnp.allclose(loss2, ref_loss2, atol=1e-5, rtol=1e-5)

    # (3) Feature-major fast path (no wrapper transposes), aligned batch.
    B3 = 4096
    x3_fm = jax.random.normal(k_x3, (IN_F, B3), jnp.float32)
    logits3_fm, loss3 = dummy_model_forward_feature_major(x3_fm, weight, bias)
    jax.block_until_ready((logits3_fm, loss3))
    ref_l3, ref_loss3 = _reference(x3_fm.T, weight, bias)
    assert logits3_fm.shape == (OUT_F, B3)
    assert jnp.allclose(logits3_fm.T, ref_l3, atol=1e-5, rtol=1e-5)
    assert jnp.allclose(loss3, ref_loss3, atol=1e-5, rtol=1e-5)

    print("KERNEL_OK")
</pallas_src>

<mosaic_0001>
module attributes {stable_mosaic.version = 11 : i64} {
  func.func @_dummy_linear_kernel(%arg0: i32, %arg1: memref<4x1x128xf32, #tpu.memory_space<vmem>>, %arg2: memref<2x4xf32, #tpu.memory_space<smem>>, %arg3: memref<2xf32, #tpu.memory_space<smem>>, %arg4: memref<2x1x128xf32, #tpu.memory_space<vmem>>, %arg5: memref<1x8x128xf32, #tpu.memory_space<vmem>>) attributes {dimension_semantics = [#tpu.dimension_semantics<parallel>], iteration_bounds = array<i64: 1>, scalar_prefetch = 0 : i64, scratch_operands = 0 : i64, tpu.core_type = #tpu.core_type<tc>, window_params = [{transform_indices = @transform_0, window_bounds = array<i64: 4, 1, 128>}, {transform_indices = @transform_1, window_bounds = array<i64: 2, 4>}, {transform_indices = @transform_2, window_bounds = array<i64: 2>}, {transform_indices = @transform_3, window_bounds = array<i64: 2, 1, 128>}, {transform_indices = @transform_4, window_bounds = array<i64: 1, 8, 128>}]} {
    %c0 = arith.constant 0 : index
    %c0_0 = arith.constant 0 : index
    %c0_1 = arith.constant 0 : index
    %0 = vector.load %arg1[%c0, %c0_0, %c0_1] : memref<4x1x128xf32, #tpu.memory_space<vmem>>, vector<1x1x128xf32>
    %1 = vector.shape_cast %0 : vector<1x1x128xf32> to vector<1x128xf32>
    %c0_2 = arith.constant 0 : index
    %c0_3 = arith.constant 0 : index
    %2 = memref.load %arg2[%c0_2, %c0_3] : memref<2x4xf32, #tpu.memory_space<smem>>
    %3 = vector.broadcast %2 : f32 to vector<1x128xf32>
    %4 = arith.mulf %1, %3 : vector<1x128xf32>
    %c1 = arith.constant 1 : index
    %c0_4 = arith.constant 0 : index
    %c0_5 = arith.constant 0 : index
    %5 = vector.load %arg1[%c1, %c0_4, %c0_5] : memref<4x1x128xf32, #tpu.memory_space<vmem>>, vector<1x1x128xf32>
    %6 = vector.shape_cast %5 : vector<1x1x128xf32> to vector<1x128xf32>
    %c0_6 = arith.constant 0 : index
    %c1_7 = arith.constant 1 : index
    %7 = memref.load %arg2[%c0_6, %c1_7] : memref<2x4xf32, #tpu.memory_space<smem>>
    %8 = vector.broadcast %7 : f32 to vector<1x128xf32>
    %9 = arith.mulf %6, %8 : vector<1x128xf32>
    %10 = arith.addf %4, %9 : vector<1x128xf32>
    %c2 = arith.constant 2 : index
    %c0_8 = arith.constant 0 : index
    %c0_9 = arith.constant 0 : index
    %11 = vector.load %arg1[%c2, %c0_8, %c0_9] : memref<4x1x128xf32, #tpu.memory_space<vmem>>, vector<1x1x128xf32>
    %12 = vector.shape_cast %11 : vector<1x1x128xf32> to vector<1x128xf32>
    %c0_10 = arith.constant 0 : index
    %c2_11 = arith.constant 2 : index
    %13 = memref.load %arg2[%c0_10, %c2_11] : memref<2x4xf32, #tpu.memory_space<smem>>
    %14 = vector.broadcast %13 : f32 to vector<1x128xf32>
    %15 = arith.mulf %12, %14 : vector<1x128xf32>
    %16 = arith.addf %10, %15 : vector<1x128xf32>
    %c3 = arith.constant 3 : index
    %c0_12 = arith.constant 0 : index
    %c0_13 = arith.constant 0 : index
    %17 = vector.load %arg1[%c3, %c0_12, %c0_13] : memref<4x1x128xf32, #tpu.memory_space<vmem>>, vector<1x1x128xf32>
    %18 = vector.shape_cast %17 : vector<1x1x128xf32> to vector<1x128xf32>
    %c0_14 = arith.constant 0 : index
    %c3_15 = arith.constant 3 : index
    %19 = memref.load %arg2[%c0_14, %c3_15] : memref<2x4xf32, #tpu.memory_space<smem>>
    %20 = vector.broadcast %19 : f32 to vector<1x128xf32>
    %21 = arith.mulf %18, %20 : vector<1x128xf32>
    %22 = arith.addf %16, %21 : vector<1x128xf32>
    %c0_16 = arith.constant 0 : index
    %23 = memref.load %arg3[%c0_16] : memref<2xf32, #tpu.memory_space<smem>>
    %24 = vector.broadcast %23 : f32 to vector<1x128xf32>
    %25 = arith.addf %22, %24 : vector<1x128xf32>
    %c0_17 = arith.constant 0 : index
    %c0_18 = arith.constant 0 : index
    %c0_19 = arith.constant 0 : index
    %26 = vector.load %arg4[%c0_17, %c0_18, %c0_19] : memref<2x1x128xf32, #tpu.memory_space<vmem>>, vector<1x1x128xf32>
    %27 = vector.shape_cast %26 : vector<1x1x128xf32> to vector<1x128xf32>
    %28 = vector.shape_cast %25 : vector<1x128xf32> to vector<1x1x128xf32>
    tpu.vector_store %arg4[%c0_17, %c0_18, %c0_19], %28 {strides = array<i32>} : memref<2x1x128xf32, #tpu.memory_space<vmem>>, vector<1x1x128xf32>,
    %c0_20 = arith.constant 0 : index
    %c0_21 = arith.constant 0 : index
    %c0_22 = arith.constant 0 : index
    %29 = vector.load %arg1[%c0_20, %c0_21, %c0_22] : memref<4x1x128xf32, #tpu.memory_space<vmem>>, vector<1x1x128xf32>
    %30 = vector.shape_cast %29 : vector<1x1x128xf32> to vector<1x128xf32>
    %c1_23 = arith.constant 1 : index
    %c0_24 = arith.constant 0 : index
    %31 = memref.load %arg2[%c1_23, %c0_24] : memref<2x4xf32, #tpu.memory_space<smem>>
    %32 = vector.broadcast %31 : f32 to vector<1x128xf32>
    %33 = arith.mulf %30, %32 : vector<1x128xf32>
    %c1_25 = arith.constant 1 : index
    %c0_26 = arith.constant 0 : index
    %c0_27 = arith.constant 0 : index
    %34 = vector.load %arg1[%c1_25, %c0_26, %c0_27] : memref<4x1x128xf32, #tpu.memory_space<vmem>>, vector<1x1x128xf32>
    %35 = vector.shape_cast %34 : vector<1x1x128xf32> to vector<1x128xf32>
    %c1_28 = arith.constant 1 : index
    %c1_29 = arith.constant 1 : index
    %36 = memref.load %arg2[%c1_28, %c1_29] : memref<2x4xf32, #tpu.memory_space<smem>>
    %37 = vector.broadcast %36 : f32 to vector<1x128xf32>
    %38 = arith.mulf %35, %37 : vector<1x128xf32>
    %39 = arith.addf %33, %38 : vector<1x128xf32>
    %c2_30 = arith.constant 2 : index
    %c0_31 = arith.constant 0 : index
    %c0_32 = arith.constant 0 : index
    %40 = vector.load %arg1[%c2_30, %c0_31, %c0_32] : memref<4x1x128xf32, #tpu.memory_space<vmem>>, vector<1x1x128xf32>
    %41 = vector.shape_cast %40 : vector<1x1x128xf32> to vector<1x128xf32>
    %c1_33 = arith.constant 1 : index
    %c2_34 = arith.constant 2 : index
    %42 = memref.load %arg2[%c1_33, %c2_34] : memref<2x4xf32, #tpu.memory_space<smem>>
    %43 = vector.broadcast %42 : f32 to vector<1x128xf32>
    %44 = arith.mulf %41, %43 : vector<1x128xf32>
    %45 = arith.addf %39, %44 : vector<1x128xf32>
    %c3_35 = arith.constant 3 : index
    %c0_36 = arith.constant 0 : index
    %c0_37 = arith.constant 0 : index
    %46 = vector.load %arg1[%c3_35, %c0_36, %c0_37] : memref<4x1x128xf32, #tpu.memory_space<vmem>>, vector<1x1x128xf32>
    %47 = vector.shape_cast %46 : vector<1x1x128xf32> to vector<1x128xf32>
    %c1_38 = arith.constant 1 : index
    %c3_39 = arith.constant 3 : index
    %48 = memref.load %arg2[%c1_38, %c3_39] : memref<2x4xf32, #tpu.memory_space<smem>>
    %49 = vector.broadcast %48 : f32 to vector<1x128xf32>
    %50 = arith.mulf %47, %49 : vector<1x128xf32>
    %51 = arith.addf %45, %50 : vector<1x128xf32>
    %c1_40 = arith.constant 1 : index
    %52 = memref.load %arg3[%c1_40] : memref<2xf32, #tpu.memory_space<smem>>
    %53 = vector.broadcast %52 : f32 to vector<1x128xf32>
    %54 = arith.addf %51, %53 : vector<1x128xf32>
    %c1_41 = arith.constant 1 : index
    %c0_42 = arith.constant 0 : index
    %c0_43 = arith.constant 0 : index
    %55 = vector.load %arg4[%c1_41, %c0_42, %c0_43] : memref<2x1x128xf32, #tpu.memory_space<vmem>>, vector<1x1x128xf32>
    %56 = vector.shape_cast %55 : vector<1x1x128xf32> to vector<1x128xf32>
    %57 = vector.shape_cast %54 : vector<1x128xf32> to vector<1x1x128xf32>
    tpu.vector_store %arg4[%c1_41, %c0_42, %c0_43], %57 {strides = array<i32>} : memref<2x1x128xf32, #tpu.memory_space<vmem>>, vector<1x1x128xf32>,
    %58 = arith.addf %25, %54 : vector<1x128xf32>
    %c128_i32 = arith.constant 128 : i32
    %59 = arith.muli %arg0, %c128_i32 : i32
    %60 = tpu.iota {dimensions = array<i32: 0>} : vector<1x128xi32>
    %61 = tpu.iota {dimensions = array<i32: 1>} : vector<1x128xi32>
    %c128_i32_44 = arith.constant 128 : i32
    %62 = vector.broadcast %c128_i32_44 : i32 to vector<1x128xi32>
    %63 = arith.muli %60, %62 : vector<1x128xi32>
    %64 = vector.broadcast %59 : i32 to vector<1x128xi32>
    %65 = arith.addi %64, %63 : vector<1x128xi32>
    %66 = arith.addi %65, %61 : vector<1x128xi32>
    %c8_i32 = arith.constant 8 : i32
    %67 = vector.broadcast %c8_i32 : i32 to vector<1x128xi32>
    %68 = arith.cmpi slt, %66, %67 : vector<1x128xi32>
    %cst = arith.constant 0.000000e+00 : f32
    %69 = vector.broadcast %cst : f32 to vector<1x128xf32>
    %70 = arith.select %68, %58, %69 : vector<1x128xi1>, vector<1x128xf32>
    %71 = vector.shape_cast %70 : vector<1x128xf32> to vector<1x1x128xf32>
    %cst_45 = arith.constant dense<0.000000e+00> : vector<1xf32>
    %72 = vector.multi_reduction <add>, %71, %cst_45 [1, 2] : vector<1x1x128xf32> to vector<1xf32>
    %73 = vector.shape_cast %72 : vector<1xf32> to vector<1x1x1xf32>
    %74 = vector.extract %73[0, 0, 0] : f32 from vector<1x1x1xf32>
    %75 = vector.broadcast %74 : f32 to vector<1x1x1xf32>
    %76 = vector.shape_cast %75 : vector<1x1x1xf32> to vector<1x1x1xf32>
    %77 = vector.broadcast %76 : vector<1x1x1xf32> to vector<1x8x128xf32>
    %c0_46 = arith.constant 0 : index
    %c0_47 = arith.constant 0 : index
    %c0_48 = arith.constant 0 : index
    %78 = vector.load %arg5[%c0_46, %c0_47, %c0_48] : memref<1x8x128xf32, #tpu.memory_space<vmem>>, vector<1x8x128xf32>
    tpu.vector_store %arg5[%c0_46, %c0_47, %c0_48], %77 {strides = array<i32>} : memref<1x8x128xf32, #tpu.memory_space<vmem>>, vector<1x8x128xf32>,
    return
  }
  func.func @transform_0(%arg0: i32) -> (i32, i32, i32) {
    %c0_i32 = arith.constant 0 : i32
    %c0_i32_0 = arith.constant 0 : i32
    %c0_i32_1 = arith.constant 0 : i32
    return %c0_i32, %arg0, %c0_i32_0 : i32, i32, i32
  }
  func.func @transform_1(%arg0: i32) -> (i32, i32) {
    %c0_i32 = arith.constant 0 : i32
    %c0_i32_0 = arith.constant 0 : i32
    %c0_i32_1 = arith.constant 0 : i32
    return %c0_i32, %c0_i32_0 : i32, i32
  }
  func.func @transform_2(%arg0: i32) -> i32 {
    %c0_i32 = arith.constant 0 : i32
    %c0_i32_0 = arith.constant 0 : i32
    return %c0_i32 : i32
  }
  func.func @transform_3(%arg0: i32) -> (i32, i32, i32) {
    %c0_i32 = arith.constant 0 : i32
    %c0_i32_0 = arith.constant 0 : i32
    %c0_i32_1 = arith.constant 0 : i32
    return %c0_i32, %arg0, %c0_i32_0 : i32, i32, i32
  }
  func.func @transform_4(%arg0: i32) -> (i32, i32, i32) {
    %c0_i32 = arith.constant 0 : i32
    %c0_i32_0 = arith.constant 0 : i32
    %c0_i32_1 = arith.constant 0 : i32
    return %arg0, %c0_i32, %c0_i32_0 : i32, i32, i32
  }
}

</mosaic_0001>

<llo_original>
// kernel: tpu_custom_call.1
$region0: #{tpu_custom_call.1}
  #allocation0 [shape = 'u32[]', space=smem, size = 0x4, offset = 0x4, fixed_abs, tag = 'smem constant byte address 0x4 - core index']
  #allocation1 [shape = 'u32[72,128]{1,0:T(1,128)}', space=vmem, size = 0x9000, scoped, tag = 'internal scratch']
  %s0 = inlined_call_operand.hbm [shape: f32[4,1,128], index: 0, kind: input, shape index: {}]
  %s1 = inlined_call_operand.hbm [shape: f32[2,4], index: 1, kind: input, shape index: {}]
  %s2 = inlined_call_operand.vmem [shape: f32[2], index: 2, kind: input, shape index: {}]
  %s3 = inlined_call_operand.hbm [shape: f32[2,1,128], index: 3, kind: output, shape index: {0}]
  %s4 = inlined_call_operand.hbm [shape: f32[1,8,128], index: 4, kind: output, shape index: {1}]
  %5 = xla_tuple %s3, %s4
  %s6 = sld [smem:[#allocation0]]
  $region42: #{tpu_custom_call.1} parent=0
    _
  %s8 = ssub.s32 1, %s6
  %s9 = scalar_select 0, %s8, %s6
  $region1: #{tpu_custom_call.1} parent=0
    #allocation2 [shape = 'u8[2048]{0}', space=vmem, size = 0x800, scoped, tag = 'input window, operand 0, single buffered']
    #allocation3 [shape = 's32[1]{0}', space=sflag, size = 0x4, scoped, tag = 'scoped memory for tpu_custom_call.1']
    #allocation4 [shape = 's32[1]{0}', space=sflag, size = 0x4, scoped, tag = 'scoped memory for tpu_custom_call.1']
    #allocation5 [shape = 's32[1]{0}', space=sflag, size = 0x4, scoped, tag = 'scoped memory for tpu_custom_call.1']
    #allocation6 [shape = 's32[1]{0}', space=sflag, size = 0x4, scoped, tag = 'scoped memory for tpu_custom_call.1']
    #allocation7 [shape = 'u8[1024]{0}', space=smem, size = 0x400, scoped, tag = 'input window, operand 1, single buffered']
    #allocation8 [shape = 'u8[512]{0}', space=smem, size = 0x200, scoped, tag = 'input window, operand 2, single buffered']
    #allocation9 [shape = 'u8[1024]{0}', space=vmem, size = 0x400, scoped, tag = 'output window, operand 0, single buffered']
    #allocation10 [shape = 'u8[4096]{0}', space=vmem, size = 0x1000, scoped, tag = 'output window, operand 1, single buffered']
    #allocation11 [shape = 's32[1]{0}', space=sflag, size = 0x4, scoped, tag = 'scoped memory for tpu_custom_call.1']
    %10 = vsyncpa [#allocation3], 0
    %11 = vsyncpa [#allocation5], 0
    %12 = vsyncpa [#allocation6], 0
    %13 = vsyncpa [#allocation4], 0
    %14 = vsyncpa [#allocation11], 0
    // Predicated region
    $region2: #{tpu_custom_call.1} parent=1 // pred_check
      _
    $region3: #{tpu_custom_call.1} parent=1 // pred_check_branch
      %16 = sbr.rel (0) target = $region5
    $region4: #{tpu_custom_call.1} parent=1 // pred_region
      %18 = vsyncadd [#allocation3], 0
      %s19 = sshll.u32 %s0, 4
      %s20 = int_to_ptr.hbm [resolvable:$true] %s19
      %s21 = sshll.u32 [#allocation2], 4
      %s22 = int_to_ptr.vmem [resolvable:$true] %s21
      %27 = dma.hbm_to_vmem [thread:$0]  %s20, 64, %s22, [#allocation3], 16, 16, 1
    $region5: #{tpu_custom_call.1} parent=1 // pred_fallthru
      _
    // Predicated region
    $region6: #{tpu_custom_call.1} parent=1 // pred_check
      _
    $region7: #{tpu_custom_call.1} parent=1 // pred_check_branch
      %29 = sbr.rel (0) target = $region9
    $region8: #{tpu_custom_call.1} parent=1 // pred_region
      %31 = vsyncadd [#allocation5], 0
      %s33 = sshll.u32 %s1, 4
      %s34 = int_to_ptr.hbm [resolvable:$true] %s33
      %36 = dma.hbm_to_smem %s34, 32, [#allocation7], [#allocation5]
    $region9: #{tpu_custom_call.1} parent=1 // pred_fallthru
      _
    // Predicated region
    $region10: #{tpu_custom_call.1} parent=1 // pred_check
      _
    $region11: #{tpu_custom_call.1} parent=1 // pred_check_branch
      %38 = sbr.rel (0) target = $region13
    $region12: #{tpu_custom_call.1} parent=1 // pred_region
      %40 = vsyncadd [#allocation6], 0
      %s42 = sshll.u32 %s2, 4
      %s43 = int_to_ptr.vmem [resolvable:$true] %s42
      %45 = dma.vmem_to_smem %s43, 16, [#allocation8], [#allocation6]
    $region13: #{tpu_custom_call.1} parent=1 // pred_fallthru
      _
    // Predicated region
    $region14: #{tpu_custom_call.1} parent=1 // pred_check
      _
    $region15: #{tpu_custom_call.1} parent=1 // pred_check_branch
      %47 = sbr.rel (0) target = $region17
    $region16: #{tpu_custom_call.1} parent=1 // pred_region
      %49 = dma.done [#allocation3], 64
    $region17: #{tpu_custom_call.1} parent=1 // pred_fallthru
      _
    // Predicated region
    $region18: #{tpu_custom_call.1} parent=1 // pred_check
      _
    $region19: #{tpu_custom_call.1} parent=1 // pred_check_branch
      %51 = sbr.rel (0) target = $region21
    $region20: #{tpu_custom_call.1} parent=1 // pred_region
      %53 = dma.done [#allocation5], 32
    $region21: #{tpu_custom_call.1} parent=1 // pred_fallthru
      _
    // Predicated region
    $region22: #{tpu_custom_call.1} parent=1 // pred_check
      _
    $region23: #{tpu_custom_call.1} parent=1 // pred_check_branch
      %55 = sbr.rel (0) target = $region25
    $region24: #{tpu_custom_call.1} parent=1 // pred_region
      %57 = dma.done [#allocation6], 16
    $region25: #{tpu_custom_call.1} parent=1 // pred_fallthru
      _
    %58 = sfence
    %v59 = vld [vmem:[#allocation2] sm:$0x1]
    %s60 = sld [smem:[#allocation7]]
    %v61 = vstv %s60
    %v62 = vmul.f32 %v59, %v61
    %s63 = scalar_lea.vmem [#allocation2], 1
    %v64 = vld [vmem:[%s63] sm:$0x1]
    %s65 = sld [smem:[#allocation7 + $0x1]]
    %v66 = vstv %s65
    %v67 = vmul.f32 %v64, %v66
    %v68 = vadd.f32 %v62, %v67
    %s69 = scalar_lea.vmem [#allocation2], 2
    %v70 = vld [vmem:[%s69] sm:$0x1]
    %s71 = sld [smem:[#allocation7 + $0x2]]
    %v72 = vstv %s71
    %v73 = vmul.f32 %v70, %v72
    %v74 = vadd.f32 %v68, %v73
    %s75 = scalar_lea.vmem [#allocation2], 3
    %v76 = vld [vmem:[%s75] sm:$0x1]
    %s77 = sld [smem:[#allocation7 + $0x3]]
    %v78 = vstv %s77
    %v79 = vmul.f32 %v76, %v78
    %v80 = vadd.f32 %v74, %v79
    %s81 = sld [smem:[#allocation8]]
    %v82 = vstv %s81
    %v83 = vadd.f32 %v80, %v82
    %84 = vst [vmem:[#allocation9] sm:$0x1] %v83
    %v85 = vld [vmem:[#allocation2] sm:$0x1]
    %s86 = sld [smem:[#allocation7 + $0x80]]
    %v87 = vstv %s86
    %v88 = vmul.f32 %v85, %v87
    %v89 = vld [vmem:[%s63] sm:$0x1]
    %s90 = sld [smem:[#allocation7 + $0x81]]
    %v91 = vstv %s90
    %v92 = vmul.f32 %v89, %v91
    %v93 = vadd.f32 %v88, %v92
    %v94 = vld [vmem:[%s69] sm:$0x1]
    %s95 = sld [smem:[#allocation7 + $0x82]]
    %v96 = vstv %s95
    %v97 = vmul.f32 %v94, %v96
    %v98 = vadd.f32 %v93, %v97
    %v99 = vld [vmem:[%s75] sm:$0x1]
    %s100 = sld [smem:[#allocation7 + $0x83]]
    %v101 = vstv %s100
    %v102 = vmul.f32 %v99, %v101
    %v103 = vadd.f32 %v98, %v102
    %s104 = sld [smem:[#allocation8 + $0x1]]
    %v105 = vstv %s104
    %v106 = vadd.f32 %v103, %v105
    %s107 = scalar_lea.vmem [#allocation9], 1
    %108 = vst [vmem:[%s107] sm:$0x1] %v106
    %v109 = vadd.f32 %v83, %v106
    %s110 = smul.u32 0, 128
    %v111 = vlaneseq
    %v112 = vshrl.u32 %v111, 7
    %v113 = vlaneseq
    %v114 = vand.u32 %v113, 127
    %v115 = vmul.u32 %v112, 128
    %v116 = vstv %s110
    %v117 = vadd.s32 %v116, %v115
    %v118 = vadd.s32 %v117, %v114
    %vm119 = vcmp.lt.s32.totalorder %v118, 8
    %v120 = vsel %vm119, %v109, 0.0
    %vm121 = vcmask 1040384
    %v122 = vsel %vm121, %v120, 0.0
    %123 = vadd.xlane.f32.xlu0 %v122
    %v124 = vpop.xlane.xlu0 %123
    %v125 = vrot.slane %v124, 4
    %v126 = vadd.f32 %v124, %v125
    %v127 = vrot.slane %v126, 2
    %v128 = vadd.f32 %v126, %v127
    %v129 = vrot.slane %v128, 1
    %v130 = vadd.f32 %v128, %v129
    %s131 = vtos %v130
    %v132 = vstv %s131
    %133 = vst [vmem:[#allocation10] sm:$0xff] %v132
    // Predicated region
    $region26: #{tpu_custom_call.1} parent=1 // pred_check
      _
    $region27: #{tpu_custom_call.1} parent=1 // pred_check_branch
      %135 = sbr.rel (0) target = $region29
    $region28: #{tpu_custom_call.1} parent=1 // pred_region
      %137 = vsyncadd [#allocation4], 0
      %s138 = sshll.u32 [#allocation9], 4
      %s139 = int_to_ptr.vmem [resolvable:$true] %s138
      %s140 = sshll.u32 %s3, 4
      %s141 = int_to_ptr.hbm [resolvable:$true] %s140
      %146 = dma.vmem_to_hbm [thread:$0]  %s139, 32, %s141, [#allocation4], 16, 16, 1
    $region29: #{tpu_custom_call.1} parent=1 // pred_fallthru
      _
    // Predicated region
    $region30: #{tpu_custom_call.1} parent=1 // pred_check
      _
    $region31: #{tpu_custom_call.1} parent=1 // pred_check_branch
      %148 = sbr.rel (0) target = $region33
    $region32: #{tpu_custom_call.1} parent=1 // pred_region
      %150 = vsyncadd [#allocation11], 0
      %s152 = sshll.u32 [#allocation10], 4
      %s153 = int_to_ptr.vmem [resolvable:$true] %s152
      %s154 = sshll.u32 %s4, 4
      %s155 = int_to_ptr.hbm [resolvable:$true] %s154
      %157 = dma.vmem_to_hbm [thread:$0]  %s153, 128, %s155, [#allocation11]
    $region33: #{tpu_custom_call.1} parent=1 // pred_fallthru
      _
    // Predicated region
    $region34: #{tpu_custom_call.1} parent=1 // pred_check
      _
    $region35: #{tpu_custom_call.1} parent=1 // pred_check_branch
      %159 = sbr.rel (0) target = $region37
    $region36: #{tpu_custom_call.1} parent=1 // pred_region
      %161 = dma.done [#allocation4], 32
    $region37: #{tpu_custom_call.1} parent=1 // pred_fallthru
      _
    // Predicated region
    $region38: #{tpu_custom_call.1} parent=1 // pred_check
      _
    $region39: #{tpu_custom_call.1} parent=1 // pred_check_branch
      %163 = sbr.rel (0) target = $region41
    $region40: #{tpu_custom_call.1} parent=1 // pred_region
      %165 = dma.done [#allocation11], 128
    $region41: #{tpu_custom_call.1} parent=1 // pred_fallthru
      _
    %166 = vsyncpa [#allocation3], 1
    %167 = vsyncpa [#allocation4], 1
    %168 = vsyncpa [#allocation11], 1
    %169 = vsyncpa [#allocation5], 1
    %170 = vsyncpa [#allocation6], 1

</llo_original>
